<compile_context>
chip_gen: v5e
topology: v5e:2x2
jax: 0.10.0
libtpu: 0.0.40
codegen_flags: <defaults>
</compile_context>

<pallas_src>
import math

import jax
import jax.numpy as jnp
from jax.experimental import pallas as pl
from jax.experimental.pallas import tpu as pltpu


def _make_kernel(fold):
    if fold == 1:
        def kernel(x_ref, s_ref, y_ref, ld_ref):
            s = s_ref[...]
            y_ref[...] = (x_ref[...] * jnp.exp(s)).astype(y_ref.dtype)
            ld_ref[...] = jnp.sum(s.astype(jnp.float32), axis=1, keepdims=True)
        return kernel

    def kernel(x_ref, s_ref, seg_ref, y_ref, ld_ref):
        s = s_ref[...]
        y_ref[...] = (x_ref[...] * jnp.exp(s)).astype(y_ref.dtype)
        # Segmented row-sum: lane k of a folded row belongs to original row
        # offset k // D.  Constant (fold*D, fold) 0/1 matrix on the MXU.
        # HIGHEST precision keeps full f32 accuracy (no bf16 truncation).
        ld_ref[...] = jnp.dot(
            s.astype(jnp.float32),
            seg_ref[...],
            preferred_element_type=jnp.float32,
            precision=jax.lax.Precision.HIGHEST,
        )
    return kernel


def _round_up(a, m):
    return ((a + m - 1) // m) * m


def _pick_tile_rows(n_rows, lane_width, itemsize, row_align):
    """Batch-tile rows: VMEM-budgeted, sublane-pack aligned, and capped so the
    grid keeps >= ~8 steps (pipelining + v7x dual-TC) when the batch allows."""
    try:
        vmem_bytes = pltpu.get_tpu_info().vmem_capacity_bytes
    except Exception:
        vmem_bytes = 64 * 1024 * 1024  # conservative (v7x-sized) fallback
    # 3 streamed arrays (x, scale, y) x 2 pipeline buffers each.
    budget = min(vmem_bytes // 4, 16 * 1024 * 1024)
    tb = budget // (6 * lane_width * itemsize)
    # Aim for >= 8 grid steps, but never shrink below the ~512-row HBM knee.
    target = max(_round_up(pl.cdiv(n_rows, 8), row_align), 512)
    tb = min(tb, target)
    tb = max(row_align, (tb // row_align) * row_align)
    return min(tb, _round_up(n_rows, row_align))


@jax.jit
def scaling_amor(x, scale):
    """Forward pass of the log-scaling layer.

    Args:
        x:     (B, D) input tensor.
        scale: (B, D) scaling tensor.
    Returns:
        (y, log_det_J): y of shape (B, D), log_det_J of shape (B,) computed in
        float32 and cast to scale.dtype.
    """
    assert x.ndim == 2 and x.shape == scale.shape
    B, D = x.shape
    out_dtype = x.dtype
    itemsize = jnp.dtype(out_dtype).itemsize
    row_align = max(8, 32 // itemsize)  # 8 f32 / 16 bf16 / 32 int8,fp8

    # Lane-dense folding: pack `fold` consecutive batch rows into one kernel
    # row of width lcm(D, 128) so stores/DMAs are full 128-lane width.
    fold = 128 // math.gcd(D, 128)
    dk = fold * D
    if fold > 1 and dk > 1024:
        fold, dk = 1, D  # folding not worth the huge row width

    if fold > 1:
        b_pad = _round_up(B, fold)
        if b_pad != B:
            x = jnp.pad(x, ((0, b_pad - B), (0, 0)))
            scale = jnp.pad(scale, ((0, b_pad - B), (0, 0)))
        bf = b_pad // fold
        x = x.reshape(bf, dk)       # contiguous row-major view: free
        scale = scale.reshape(bf, dk)
    else:
        b_pad, bf = B, B            # no padding; Pallas clips the ragged tail

    tb = _pick_tile_rows(bf, dk, itemsize, row_align)
    grid = (pl.cdiv(bf, tb),)

    # Derive the VMEM limit from the actual double-buffered working set.
    working = 6 * tb * dk * itemsize + 2 * tb * fold * 4
    if fold > 1:
        working += 2 * dk * fold * 4
    vmem_limit = int(working + 4 * 1024 * 1024)

    in_specs = [
        pl.BlockSpec((tb, dk), lambda i: (i, 0)),
        pl.BlockSpec((tb, dk), lambda i: (i, 0)),
    ]
    operands = [x, scale]
    if fold > 1:
        # Hoisted constant segment matrix (resident across grid steps).
        seg = (jnp.arange(dk)[:, None] // D == jnp.arange(fold)[None, :])
        operands.append(seg.astype(jnp.float32))
        in_specs.append(pl.BlockSpec((dk, fold), lambda i: (0, 0)))

    y, logdet = pl.pallas_call(
        _make_kernel(fold),
        grid=grid,
        in_specs=in_specs,
        out_specs=(
            pl.BlockSpec((tb, dk), lambda i: (i, 0)),
            pl.BlockSpec((tb, fold), lambda i: (i, 0)),
        ),
        out_shape=(
            jax.ShapeDtypeStruct((bf, dk), out_dtype),
            jax.ShapeDtypeStruct((bf, fold), jnp.float32),
        ),
        compiler_params=pltpu.CompilerParams(
            dimension_semantics=("parallel",),
            vmem_limit_bytes=vmem_limit,
        ),
        cost_estimate=pl.CostEstimate(
            flops=2 * B * D,
            transcendentals=B * D,
            bytes_accessed=3 * B * D * itemsize + B * 4,
        ),
    )(*operands)

    if fold > 1:
        y = y.reshape(b_pad, D)
        log_det_j = logdet.reshape(b_pad)
        if b_pad != B:
            y = y[:B]
            log_det_j = log_det_j[:B]
    else:
        log_det_j = logdet.reshape(B)

    return y, log_det_j.astype(scale.dtype)


if __name__ == "__main__":
    key = jax.random.PRNGKey(0)
    kx, ks = jax.random.split(key)

    # Case 1: D < 128, 128 % D == 0 -> lane folding (D=32 -> 4 rows/vreg row).
    B, D = 4, 32
    x = jax.random.normal(kx, (B, D), dtype=jnp.float32)
    scale = 0.1 * jax.random.normal(ks, (B, D), dtype=jnp.float32)
    y, log_det_J = scaling_amor(x, scale)
    jax.block_until_ready((y, log_det_J))
    assert y.shape == (B, D) and log_det_J.shape == (B,)
    assert jnp.allclose(y, x * jnp.exp(scale), atol=1e-5, rtol=1e-5)
    assert jnp.allclose(log_det_J, jnp.sum(scale, axis=1), atol=1e-5, rtol=1e-5)

    # Case 2: D >= 128 (no folding) with a batch not a multiple of 8
    # -> exercises the ragged-tail clipping path (no wrapper pad/slice).
    B2, D2 = 20, 256
    x2 = jax.random.normal(kx, (B2, D2), dtype=jnp.float32)
    scale2 = 0.1 * jax.random.normal(ks, (B2, D2), dtype=jnp.float32)
    y2, ld2 = scaling_amor(x2, scale2)
    jax.block_until_ready((y2, ld2))
    assert y2.shape == (B2, D2) and ld2.shape == (B2,)
    assert jnp.allclose(y2, x2 * jnp.exp(scale2), atol=1e-5, rtol=1e-5)
    assert jnp.allclose(ld2, jnp.sum(scale2, axis=1), atol=1e-4, rtol=1e-5)

    # Case 3: D with 128 % D != 0 (generalized folding: D=48 -> fold=8,
    # dk=384) and a batch that needs padding to a multiple of fold.
    B3, D3 = 10, 48
    x3 = jax.random.normal(kx, (B3, D3), dtype=jnp.float32)
    scale3 = 0.1 * jax.random.normal(ks, (B3, D3), dtype=jnp.float32)
    y3, ld3 = scaling_amor(x3, scale3)
    jax.block_until_ready((y3, ld3))
    assert y3.shape == (B3, D3) and ld3.shape == (B3,)
    assert jnp.allclose(y3, x3 * jnp.exp(scale3), atol=1e-5, rtol=1e-5)
    assert jnp.allclose(ld3, jnp.sum(scale3, axis=1), atol=1e-5, rtol=1e-5)

    print("KERNEL_OK")
</pallas_src>

<mosaic_0001>
module attributes {stable_mosaic.version = 11 : i64} {
  func.func @kernel(%arg0: i32, %arg1: memref<8x128xf32, #tpu.memory_space<vmem>>, %arg2: memref<8x128xf32, #tpu.memory_space<vmem>>, %arg3: memref<128x4xf32, #tpu.memory_space<vmem>>, %arg4: memref<8x128xf32, #tpu.memory_space<vmem>>, %arg5: memref<8x4xf32, #tpu.memory_space<vmem>>) attributes {dimension_semantics = [#tpu.dimension_semantics<parallel>], iteration_bounds = array<i64: 1>, scalar_prefetch = 0 : i64, scratch_operands = 0 : i64, tpu.core_type = #tpu.core_type<tc>, window_params = [{transform_indices = @transform_0, window_bounds = array<i64: 8, 128>}, {transform_indices = @transform_1, window_bounds = array<i64: 8, 128>}, {pipeline_mode = #tpu.pipeline_mode<synchronous>, transform_indices = @transform_2, window_bounds = array<i64: 128, 4>}, {transform_indices = @transform_3, window_bounds = array<i64: 8, 128>}, {transform_indices = @transform_4, window_bounds = array<i64: 8, 4>}]} {
    %c0 = arith.constant 0 : index
    %c0_0 = arith.constant 0 : index
    %0 = vector.load %arg2[%c0, %c0_0] : memref<8x128xf32, #tpu.memory_space<vmem>>, vector<8x128xf32>
    %c0_1 = arith.constant 0 : index
    %c0_2 = arith.constant 0 : index
    %1 = vector.load %arg1[%c0_1, %c0_2] : memref<8x128xf32, #tpu.memory_space<vmem>>, vector<8x128xf32>
    %2 = math.exp %0 : vector<8x128xf32>
    %3 = arith.mulf %1, %2 : vector<8x128xf32>
    %c0_3 = arith.constant 0 : index
    %c0_4 = arith.constant 0 : index
    %4 = vector.load %arg4[%c0_3, %c0_4] : memref<8x128xf32, #tpu.memory_space<vmem>>, vector<8x128xf32>
    tpu.vector_store %arg4[%c0_3, %c0_4], %3 {strides = array<i32>} : memref<8x128xf32, #tpu.memory_space<vmem>>, vector<8x128xf32>,
    %c0_5 = arith.constant 0 : index
    %c0_6 = arith.constant 0 : index
    %5 = vector.load %arg3[%c0_5, %c0_6] : memref<128x4xf32, #tpu.memory_space<vmem>>, vector<128x4xf32>
    %cst = arith.constant dense<0.000000e+00> : vector<8x4xf32>
    %6 = tpu.matmul %0, %5, %cst {dimension_numbers = #tpu.dot_dimension_numbers<[1], [0], [0], [1], [0, 0, 1, 1], [], []>, precision = #tpu.contract_precision<fp32>} : vector<8x128xf32>, vector<128x4xf32>, vector<8x4xf32> -> vector<8x4xf32>
    %c0_7 = arith.constant 0 : index
    %c0_8 = arith.constant 0 : index
    %7 = vector.load %arg5[%c0_7, %c0_8] : memref<8x4xf32, #tpu.memory_space<vmem>>, vector<8x4xf32>
    tpu.vector_store %arg5[%c0_7, %c0_8], %6 {strides = array<i32>} : memref<8x4xf32, #tpu.memory_space<vmem>>, vector<8x4xf32>,
    return
  }
  func.func @transform_0(%arg0: i32) -> (i32, i32) {
    %c0_i32 = arith.constant 0 : i32
    %c0_i32_0 = arith.constant 0 : i32
    return %arg0, %c0_i32 : i32, i32
  }
  func.func @transform_1(%arg0: i32) -> (i32, i32) {
    %c0_i32 = arith.constant 0 : i32
    %c0_i32_0 = arith.constant 0 : i32
    return %arg0, %c0_i32 : i32, i32
  }
  func.func @transform_2(%arg0: i32) -> (i32, i32) {
    %c0_i32 = arith.constant 0 : i32
    %c0_i32_0 = arith.constant 0 : i32
    %c0_i32_1 = arith.constant 0 : i32
    return %c0_i32, %c0_i32_0 : i32, i32
  }
  func.func @transform_3(%arg0: i32) -> (i32, i32) {
    %c0_i32 = arith.constant 0 : i32
    %c0_i32_0 = arith.constant 0 : i32
    return %arg0, %c0_i32 : i32, i32
  }
  func.func @transform_4(%arg0: i32) -> (i32, i32) {
    %c0_i32 = arith.constant 0 : i32
    %c0_i32_0 = arith.constant 0 : i32
    return %arg0, %c0_i32 : i32, i32
  }
}

</mosaic_0001>

<llo_original>
// kernel: scaling_amor.1
$region0: #{scaling_amor.1}
  #allocation0 [shape = 'u32[]', space=smem, size = 0x4, offset = 0x4, fixed_abs, tag = 'smem constant byte address 0x4 - core index']
  #allocation1 [shape = 'u32[72,128]{1,0:T(1,128)}', space=vmem, size = 0x9000, scoped, tag = 'internal scratch']
  %s0 = inlined_call_operand.vmem [shape: f32[1,128], index: 0, kind: input, shape index: {}]
  %s1 = inlined_call_operand.vmem [shape: f32[1,128], index: 1, kind: input, shape index: {}]
  %s2 = inlined_call_operand.vmem [shape: f32[128,4], index: 2, kind: input, shape index: {}]
  %s3 = inlined_call_operand.vmem [shape: f32[1,128], index: 3, kind: output, shape index: {0}]
  %s4 = inlined_call_operand.hbm [shape: f32[1,4], index: 4, kind: output, shape index: {1}]
  %5 = xla_tuple %s3, %s4
  %s6 = sld [smem:[#allocation0]]
  $region60: #{scaling_amor.1} parent=0
    _
  %s8 = ssub.s32 1, %s6
  %s9 = scalar_select 0, %s8, %s6
  $region1: #{scaling_amor.1} parent=0
    #allocation2 [shape = 'u8[4096]{0}', space=vmem, size = 0x1000, scoped, tag = 'output window, operand 0, single buffered']
    #allocation3 [shape = 'u8[4096]{0}', space=vmem, size = 0x1000, scoped, tag = 'output window, operand 1, single buffered']
    #allocation4 [shape = 's32[1]{0}', space=sflag, size = 0x4, scoped, tag = 'scoped memory for scaling_amor.1']
    %10 = vsyncpa [#allocation4], 0
    // Predicated region
    $region2: #{scaling_amor.1} parent=1 // pred_check
      _
    $region3: #{scaling_amor.1} parent=1 // pred_check_branch
      %12 = sbr.rel (0) target = $region5
    $region4: #{scaling_amor.1} parent=1 // pred_region
      _
    $region5: #{scaling_amor.1} parent=1 // pred_fallthru
      _
    // Predicated region
    $region6: #{scaling_amor.1} parent=1 // pred_check
      _
    $region7: #{scaling_amor.1} parent=1 // pred_check_branch
      %14 = sbr.rel (0) target = $region9
    $region8: #{scaling_amor.1} parent=1 // pred_region
      _
    $region9: #{scaling_amor.1} parent=1 // pred_fallthru
      _
    // Predicated region
    $region10: #{scaling_amor.1} parent=1 // pred_check
      _
    $region11: #{scaling_amor.1} parent=1 // pred_check_branch
      %16 = sbr.rel (0) target = $region13
    $region12: #{scaling_amor.1} parent=1 // pred_region
      _
    $region13: #{scaling_amor.1} parent=1 // pred_fallthru
      _
    %v17 = vld [vmem:[%s1] sm:$0xff]
    %v18 = vld [vmem:[%s0] sm:$0xff]
    %v19 = vmul.f32 %v17, 1.442695
    %v20 = vpow.pop %v19
    %v21 = vmul.f32 %v18, %v20
    %22 = vst [vmem:[#allocation2] sm:$0xff] %v21
    %v23 = vld [vmem:[%s2] sm:$0xff]
    %v24 = vld [vmem:[%s2 + $0x8] sm:$0xff]
    %v25 = vld [vmem:[%s2 + $0x10] sm:$0xff]
    %v26 = vld [vmem:[%s2 + $0x18] sm:$0xff]
    %v27 = vld [vmem:[%s2 + $0x20] sm:$0xff]
    %v28 = vld [vmem:[%s2 + $0x28] sm:$0xff]
    %v29 = vld [vmem:[%s2 + $0x30] sm:$0xff]
    %v30 = vld [vmem:[%s2 + $0x38] sm:$0xff]
    %v31 = vld [vmem:[%s2 + $0x40] sm:$0xff]
    %v32 = vld [vmem:[%s2 + $0x48] sm:$0xff]
    %v33 = vld [vmem:[%s2 + $0x50] sm:$0xff]
    %v34 = vld [vmem:[%s2 + $0x58] sm:$0xff]
    %v35 = vld [vmem:[%s2 + $0x60] sm:$0xff]
    %v36 = vld [vmem:[%s2 + $0x68] sm:$0xff]
    %v37 = vld [vmem:[%s2 + $0x70] sm:$0xff]
    %v38 = vld [vmem:[%s2 + $0x78] sm:$0xff]
    %v39 = vand.u32 %v38, 4294901760
    %40 = vmatpush.msra.mxu0 %v39
    %v41 = vand.u32 %v37, 4294901760
    %42 = vmatpush.msra.mxu0 %v41
    %v43 = vand.u32 %v36, 4294901760
    %44 = vmatpush.msra.mxu0 %v43
    %v45 = vand.u32 %v35, 4294901760
    %46 = vmatpush.msra.mxu0 %v45
    %v47 = vand.u32 %v34, 4294901760
    %48 = vmatpush.msra.mxu0 %v47
    %v49 = vand.u32 %v33, 4294901760
    %50 = vmatpush.msra.mxu0 %v49
    %v51 = vand.u32 %v32, 4294901760
    %52 = vmatpush.msra.mxu0 %v51
    %v53 = vand.u32 %v31, 4294901760
    %54 = vmatpush.msra.mxu0 %v53
    %v55 = vand.u32 %v30, 4294901760
    %56 = vmatpush.msra.mxu0 %v55
    %v57 = vand.u32 %v29, 4294901760
    %58 = vmatpush.msra.mxu0 %v57
    %v59 = vand.u32 %v28, 4294901760
    %60 = vmatpush.msra.mxu0 %v59
    %v61 = vand.u32 %v27, 4294901760
    %62 = vmatpush.msra.mxu0 %v61
    %v63 = vand.u32 %v26, 4294901760
    %64 = vmatpush.msra.mxu0 %v63
    %v65 = vand.u32 %v25, 4294901760
    %66 = vmatpush.msra.mxu0 %v65
    %v67 = vand.u32 %v24, 4294901760
    %68 = vmatpush.msra.mxu0 %v67
    %v69 = vand.u32 %v23, 4294901760
    %70 = vmatpush.msra.mxu0 %v69
    %v71 = vand.u32 %v17, 4294901760
    %v72 = vsub.f32 %v17, %v71
    %v73 = vand.u32 %v72, 4294901760
    %v74 = vsub.f32 %v72, %v73
    %v75 = vand.u32 %v74, 4294901760
    %76 = vmatmul.f32.gmra.mxu0 %v75
    %v77 = vpop.f32.mrf.mxu0
    %v78 = vadd.f32 0.0, %v77
    %79 = vdwg.mxu0
    %v80 = vand.u32 %v38, 4294901760
    %v81 = vsub.f32 %v38, %v80
    %v82 = vand.u32 %v81, 4294901760
    %v83 = vsub.f32 %v81, %v82
    %v84 = vand.u32 %v83, 4294901760
    %85 = vmatpush.msra.mxu0 %v84
    %v86 = vand.u32 %v37, 4294901760
    %v87 = vsub.f32 %v37, %v86
    %v88 = vand.u32 %v87, 4294901760
    %v89 = vsub.f32 %v87, %v88
    %v90 = vand.u32 %v89, 4294901760
    %91 = vmatpush.msra.mxu0 %v90
    %v92 = vand.u32 %v36, 4294901760
    %v93 = vsub.f32 %v36, %v92
    %v94 = vand.u32 %v93, 4294901760
    %v95 = vsub.f32 %v93, %v94
    %v96 = vand.u32 %v95, 4294901760
    %97 = vmatpush.msra.mxu0 %v96
    %v98 = vand.u32 %v35, 4294901760
    %v99 = vsub.f32 %v35, %v98
    %v100 = vand.u32 %v99, 4294901760
    %v101 = vsub.f32 %v99, %v100
    %v102 = vand.u32 %v101, 4294901760
    %103 = vmatpush.msra.mxu0 %v102
    %v104 = vand.u32 %v34, 4294901760
    %v105 = vsub.f32 %v34, %v104
    %v106 = vand.u32 %v105, 4294901760
    %v107 = vsub.f32 %v105, %v106
    %v108 = vand.u32 %v107, 4294901760
    %109 = vmatpush.msra.mxu0 %v108
    %v110 = vand.u32 %v33, 4294901760
    %v111 = vsub.f32 %v33, %v110
    %v112 = vand.u32 %v111, 4294901760
    %v113 = vsub.f32 %v111, %v112
    %v114 = vand.u32 %v113, 4294901760
    %115 = vmatpush.msra.mxu0 %v114
    %v116 = vand.u32 %v32, 4294901760
    %v117 = vsub.f32 %v32, %v116
    %v118 = vand.u32 %v117, 4294901760
    %v119 = vsub.f32 %v117, %v118
    %v120 = vand.u32 %v119, 4294901760
    %121 = vmatpush.msra.mxu0 %v120
    %v122 = vand.u32 %v31, 4294901760
    %v123 = vsub.f32 %v31, %v122
    %v124 = vand.u32 %v123, 4294901760
    %v125 = vsub.f32 %v123, %v124
    %v126 = vand.u32 %v125, 4294901760
    %127 = vmatpush.msra.mxu0 %v126
    %v128 = vand.u32 %v30, 4294901760
    %v129 = vsub.f32 %v30, %v128
    %v130 = vand.u32 %v129, 4294901760
    %v131 = vsub.f32 %v129, %v130
    %v132 = vand.u32 %v131, 4294901760
    %133 = vmatpush.msra.mxu0 %v132
    %v134 = vand.u32 %v29, 4294901760
    %v135 = vsub.f32 %v29, %v134
    %v136 = vand.u32 %v135, 4294901760
    %v137 = vsub.f32 %v135, %v136
    %v138 = vand.u32 %v137, 4294901760
    %139 = vmatpush.msra.mxu0 %v138
    %v140 = vand.u32 %v28, 4294901760
    %v141 = vsub.f32 %v28, %v140
    %v142 = vand.u32 %v141, 4294901760
    %v143 = vsub.f32 %v141, %v142
    %v144 = vand.u32 %v143, 4294901760
    %145 = vmatpush.msra.mxu0 %v144
    %v146 = vand.u32 %v27, 4294901760
    %v147 = vsub.f32 %v27, %v146
    %v148 = vand.u32 %v147, 4294901760
    %v149 = vsub.f32 %v147, %v148
    %v150 = vand.u32 %v149, 4294901760
    %151 = vmatpush.msra.mxu0 %v150
    %v152 = vand.u32 %v26, 4294901760
    %v153 = vsub.f32 %v26, %v152
    %v154 = vand.u32 %v153, 4294901760
    %v155 = vsub.f32 %v153, %v154
    %v156 = vand.u32 %v155, 4294901760
    %157 = vmatpush.msra.mxu0 %v156
    %v158 = vand.u32 %v25, 4294901760
    %v159 = vsub.f32 %v25, %v158
    %v160 = vand.u32 %v159, 4294901760
    %v161 = vsub.f32 %v159, %v160
    %v162 = vand.u32 %v161, 4294901760
    %163 = vmatpush.msra.mxu0 %v162
    %v164 = vand.u32 %v24, 4294901760
    %v165 = vsub.f32 %v24, %v164
    %v166 = vand.u32 %v165, 4294901760
    %v167 = vsub.f32 %v165, %v166
    %v168 = vand.u32 %v167, 4294901760
    %169 = vmatpush.msra.mxu0 %v168
    %v170 = vand.u32 %v23, 4294901760
    %v171 = vsub.f32 %v23, %v170
    %v172 = vand.u32 %v171, 4294901760
    %v173 = vsub.f32 %v171, %v172
    %v174 = vand.u32 %v173, 4294901760
    %175 = vmatpush.msra.mxu0 %v174
    %v176 = vand.u32 %v17, 4294901760
    %177 = vmatmul.f32.gmra.mxu0 %v176
    %v178 = vpop.f32.mrf.mxu0
    %v179 = vadd.f32 %v78, %v178
    %180 = vdwg.mxu0
    %v181 = vand.u32 %v38, 4294901760
    %v182 = vsub.f32 %v38, %v181
    %183 = vmatpush.msra.mxu0 %v182
    %v184 = vand.u32 %v37, 4294901760
    %v185 = vsub.f32 %v37, %v184
    %186 = vmatpush.msra.mxu0 %v185
    %v187 = vand.u32 %v36, 4294901760
    %v188 = vsub.f32 %v36, %v187
    %189 = vmatpush.msra.mxu0 %v188
    %v190 = vand.u32 %v35, 4294901760
    %v191 = vsub.f32 %v35, %v190
    %192 = vmatpush.msra.mxu0 %v191
    %v193 = vand.u32 %v34, 4294901760
    %v194 = vsub.f32 %v34, %v193
    %195 = vmatpush.msra.mxu0 %v194
    %v196 = vand.u32 %v33, 4294901760
    %v197 = vsub.f32 %v33, %v196
    %198 = vmatpush.msra.mxu0 %v197
    %v199 = vand.u32 %v32, 4294901760
    %v200 = vsub.f32 %v32, %v199
    %201 = vmatpush.msra.mxu0 %v200
    %v202 = vand.u32 %v31, 4294901760
    %v203 = vsub.f32 %v31, %v202
    %204 = vmatpush.msra.mxu0 %v203
    %v205 = vand.u32 %v30, 4294901760
    %v206 = vsub.f32 %v30, %v205
    %207 = vmatpush.msra.mxu0 %v206
    %v208 = vand.u32 %v29, 4294901760
    %v209 = vsub.f32 %v29, %v208
    %210 = vmatpush.msra.mxu0 %v209
    %v211 = vand.u32 %v28, 4294901760
    %v212 = vsub.f32 %v28, %v211
    %213 = vmatpush.msra.mxu0 %v212
    %v214 = vand.u32 %v27, 4294901760
    %v215 = vsub.f32 %v27, %v214
    %216 = vmatpush.msra.mxu0 %v215
    %v217 = vand.u32 %v26, 4294901760
    %v218 = vsub.f32 %v26, %v217
    %219 = vmatpush.msra.mxu0 %v218
    %v220 = vand.u32 %v25, 4294901760
    %v221 = vsub.f32 %v25, %v220
    %222 = vmatpush.msra.mxu0 %v221
    %v223 = vand.u32 %v24, 4294901760
    %v224 = vsub.f32 %v24, %v223
    %225 = vmatpush.msra.mxu0 %v224
    %v226 = vand.u32 %v23, 4294901760
    %v227 = vsub.f32 %v23, %v226
    %228 = vmatpush.msra.mxu0 %v227
    %v229 = vand.u32 %v17, 4294901760
    %v230 = vsub.f32 %v17, %v229
    %231 = vmatmul.f32.gmra.mxu0 %v230
    %v232 = vpop.f32.mrf.mxu0
    %v233 = vadd.f32 %v179, %v232
    %234 = vdwg.mxu0
    %v235 = vand.u32 %v38, 4294901760
    %236 = vmatpush.msra.mxu0 %v235
    %v237 = vand.u32 %v37, 4294901760
    %238 = vmatpush.msra.mxu0 %v237
    %v239 = vand.u32 %v36, 4294901760
    %240 = vmatpush.msra.mxu0 %v239
    %v241 = vand.u32 %v35, 4294901760
    %242 = vmatpush.msra.mxu0 %v241
    %v243 = vand.u32 %v34, 4294901760
    %244 = vmatpush.msra.mxu0 %v243
    %v245 = vand.u32 %v33, 4294901760
    %246 = vmatpush.msra.mxu0 %v245
    %v247 = vand.u32 %v32, 4294901760
    %248 = vmatpush.msra.mxu0 %v247
    %v249 = vand.u32 %v31, 4294901760
    %250 = vmatpush.msra.mxu0 %v249
    %v251 = vand.u32 %v30, 4294901760
    %252 = vmatpush.msra.mxu0 %v251
    %v253 = vand.u32 %v29, 4294901760
    %254 = vmatpush.msra.mxu0 %v253
    %v255 = vand.u32 %v28, 4294901760
    %256 = vmatpush.msra.mxu0 %v255
    %v257 = vand.u32 %v27, 4294901760
    %258 = vmatpush.msra.mxu0 %v257
    %v259 = vand.u32 %v26, 4294901760
    %260 = vmatpush.msra.mxu0 %v259
    %v261 = vand.u32 %v25, 4294901760
    %262 = vmatpush.msra.mxu0 %v261
    %v263 = vand.u32 %v24, 4294901760
    %264 = vmatpush.msra.mxu0 %v263
    %v265 = vand.u32 %v23, 4294901760
    %266 = vmatpush.msra.mxu0 %v265
    %v267 = vand.u32 %v17, 4294901760
    %v268 = vsub.f32 %v17, %v267
    %v269 = vand.u32 %v268, 4294901760
    %270 = vmatmul.f32.gmra.mxu0 %v269
    %v271 = vpop.f32.mrf.mxu0
    %v272 = vadd.f32 %v233, %v271
    %273 = vdwg.mxu0
    %v274 = vand.u32 %v38, 4294901760
    %v275 = vsub.f32 %v38, %v274
    %v276 = vand.u32 %v275, 4294901760
    %277 = vmatpush.msra.mxu0 %v276
    %v278 = vand.u32 %v37, 4294901760
    %v279 = vsub.f32 %v37, %v278
    %v280 = vand.u32 %v279, 4294901760
    %281 = vmatpush.msra.mxu0 %v280
    %v282 = vand.u32 %v36, 4294901760
    %v283 = vsub.f32 %v36, %v282
    %v284 = vand.u32 %v283, 4294901760
    %285 = vmatpush.msra.mxu0 %v284
    %v286 = vand.u32 %v35, 4294901760
    %v287 = vsub.f32 %v35, %v286
    %v288 = vand.u32 %v287, 4294901760
    %289 = vmatpush.msra.mxu0 %v288
    %v290 = vand.u32 %v34, 4294901760
    %v291 = vsub.f32 %v34, %v290
    %v292 = vand.u32 %v291, 4294901760
    %293 = vmatpush.msra.mxu0 %v292
    %v294 = vand.u32 %v33, 4294901760
    %v295 = vsub.f32 %v33, %v294
    %v296 = vand.u32 %v295, 4294901760
    %297 = vmatpush.msra.mxu0 %v296
    %v298 = vand.u32 %v32, 4294901760
    %v299 = vsub.f32 %v32, %v298
    %v300 = vand.u32 %v299, 4294901760
    %301 = vmatpush.msra.mxu0 %v300
    %v302 = vand.u32 %v31, 4294901760
    %v303 = vsub.f32 %v31, %v302
    %v304 = vand.u32 %v303, 4294901760
    %305 = vmatpush.msra.mxu0 %v304
    %v306 = vand.u32 %v30, 4294901760
    %v307 = vsub.f32 %v30, %v306
    %v308 = vand.u32 %v307, 4294901760
    %309 = vmatpush.msra.mxu0 %v308
    %v310 = vand.u32 %v29, 4294901760
    %v311 = vsub.f32 %v29, %v310
    %v312 = vand.u32 %v311, 4294901760
    %313 = vmatpush.msra.mxu0 %v312
    %v314 = vand.u32 %v28, 4294901760
    %v315 = vsub.f32 %v28, %v314
    %v316 = vand.u32 %v315, 4294901760
    %317 = vmatpush.msra.mxu0 %v316
    %v318 = vand.u32 %v27, 4294901760
    %v319 = vsub.f32 %v27, %v318
    %v320 = vand.u32 %v319, 4294901760
    %321 = vmatpush.msra.mxu0 %v320
    %v322 = vand.u32 %v26, 4294901760
    %v323 = vsub.f32 %v26, %v322
    %v324 = vand.u32 %v323, 4294901760
    %325 = vmatpush.msra.mxu0 %v324
    %v326 = vand.u32 %v25, 4294901760
    %v327 = vsub.f32 %v25, %v326
    %v328 = vand.u32 %v327, 4294901760
    %329 = vmatpush.msra.mxu0 %v328
    %v330 = vand.u32 %v24, 4294901760
    %v331 = vsub.f32 %v24, %v330
    %v332 = vand.u32 %v331, 4294901760
    %333 = vmatpush.msra.mxu0 %v332
    %v334 = vand.u32 %v23, 4294901760
    %v335 = vsub.f32 %v23, %v334
    %v336 = vand.u32 %v335, 4294901760
    %337 = vmatpush.msra.mxu0 %v336
    %v338 = vand.u32 %v17, 4294901760
    %339 = vmatmul.f32.gmra.mxu0 %v338
    %v340 = vpop.f32.mrf.mxu0
    %v341 = vadd.f32 %v272, %v340
    %342 = vdwg.mxu0
    %v343 = vand.u32 %v38, 4294901760
    %344 = vmatpush.msra.mxu0 %v343
    %v345 = vand.u32 %v37, 4294901760
    %346 = vmatpush.msra.mxu0 %v345
    %v347 = vand.u32 %v36, 4294901760
    %348 = vmatpush.msra.mxu0 %v347
    %v349 = vand.u32 %v35, 4294901760
    %350 = vmatpush.msra.mxu0 %v349
    %v351 = vand.u32 %v34, 4294901760
    %352 = vmatpush.msra.mxu0 %v351
    %v353 = vand.u32 %v33, 4294901760
    %354 = vmatpush.msra.mxu0 %v353
    %v355 = vand.u32 %v32, 4294901760
    %356 = vmatpush.msra.mxu0 %v355
    %v357 = vand.u32 %v31, 4294901760
    %358 = vmatpush.msra.mxu0 %v357
    %v359 = vand.u32 %v30, 4294901760
    %360 = vmatpush.msra.mxu0 %v359
    %v361 = vand.u32 %v29, 4294901760
    %362 = vmatpush.msra.mxu0 %v361
    %v363 = vand.u32 %v28, 4294901760
    %364 = vmatpush.msra.mxu0 %v363
    %v365 = vand.u32 %v27, 4294901760
    %366 = vmatpush.msra.mxu0 %v365
    %v367 = vand.u32 %v26, 4294901760
    %368 = vmatpush.msra.mxu0 %v367
    %v369 = vand.u32 %v25, 4294901760
    %370 = vmatpush.msra.mxu0 %v369
    %v371 = vand.u32 %v24, 4294901760
    %372 = vmatpush.msra.mxu0 %v371
    %v373 = vand.u32 %v23, 4294901760
    %374 = vmatpush.msra.mxu0 %v373
    %v375 = vand.u32 %v17, 4294901760
    %376 = vmatmul.f32.gmra.mxu0 %v375
    %v377 = vpop.f32.mrf.mxu0
    %v378 = vadd.f32 %v341, %v377
    %379 = vdwg.mxu0
    %vm380 = vcmask 31744
    %381 = vst.msk [vmem:[#allocation3] sm:$0xff] %vm380, %v378
    // Predicated region
    $region14: #{scaling_amor.1} parent=1 // pred_check
      _
    $region15: #{scaling_amor.1} parent=1 // pred_check_branch
      %383 = sbr.rel (0) target = $region17
    $region16: #{scaling_amor.1} parent=1 // pred_region
      // Predicated region
      $region18: #{scaling_amor.1} parent=16 // pred_check
        _
      $region19: #{scaling_amor.1} parent=16 // pred_check_branch
        %385 = sbr.rel (0) target = $region21
      $region20: #{scaling_amor.1} parent=16 // pred_region
        // Predicated region
        $region22: #{scaling_amor.1} parent=20 // pred_check
          _
        $region23: #{scaling_amor.1} parent=20 // pred_check_branch
          %387 = sbr.rel target = $region25
        $region24: #{scaling_amor.1} parent=20 // pred_region
          // Predicated region
          $region37: #{scaling_amor.1} parent=24 // pred_check
            _
          $region38: #{scaling_amor.1} parent=24 // pred_check_branch
            %403 = sbr.rel (0) target = $region40
          $region39: #{scaling_amor.1} parent=24 // pred_region
            %s405 = ssub.s32 2, 1
            loop: start=0, step=1, limit=1
            $region41: #{scaling_amor.1} parent=39 // loop_pre_header
              _
            $region42: #{scaling_amor.1} parent=39 // loop_header
              %s407 = sphi 0, %s411
              %p408 = scmp.ge.s32.totalorder %s407, 1
              %s412 = sphi [#allocation2], [#allocation2]
              %s413 = sphi %s3, %s3
            $region43: #{scaling_amor.1} parent=39 // loop_header_branch
              %410 = sbr.rel (%p408) target = $region47
            $region44: #{scaling_amor.1} parent=39 // loop_body
              %v414 = vld [vmem:[%s412] sm:%s405]
              %415 = vst [vmem:[%s413] sm:%s405] %v414
            $region45: #{scaling_amor.1} parent=39 // loop_footer
              %s411 = sadd.s32 1, %s407
            $region46: #{scaling_amor.1} parent=39 // loop_footer_branch
              %406 = sbr.rel target = $region42
            $region47: #{scaling_amor.1} parent=39 // loop_exit
              _
          $region40: #{scaling_amor.1} parent=24 // pred_fallthru
            _
        $region25: #{scaling_amor.1} parent=20 // pred_fallthru
          _
        // Predicated region
        $region26: #{scaling_amor.1} parent=20 // pred_check
          _
        $region27: #{scaling_amor.1} parent=20 // pred_check_branch
          %389 = sbr.rel (0) target = $region29
        $region28: #{scaling_amor.1} parent=20 // pred_region
          %s391 = ssub.s32 2, 1
          loop: start=0, step=1, limit=1
          $region30: #{scaling_amor.1} parent=28 // loop_pre_header
            _
          $region31: #{scaling_amor.1} parent=28 // loop_header
            %s393 = sphi 0, %s397
            %p394 = scmp.ge.s32.totalorder %s393, 1
            %s398 = sphi [#allocation2], [#allocation2]
            %s399 = sphi %s3, %s3
          $region32: #{scaling_amor.1} parent=28 // loop_header_branch
            %396 = sbr.rel (%p394) target = $region36
          $region33: #{scaling_amor.1} parent=28 // loop_body
            %v400 = vld [vmem:[%s398] sm:%s391]
            %401 = vst [vmem:[%s399] sm:%s391] %v400
          $region34: #{scaling_amor.1} parent=28 // loop_footer
            %s397 = sadd.s32 1, %s393
          $region35: #{scaling_amor.1} parent=28 // loop_footer_branch
            %392 = sbr.rel target = $region31
          $region36: #{scaling_amor.1} parent=28 // loop_exit
            _
        $region29: #{scaling_amor.1} parent=20 // pred_fallthru
          _
      $region21: #{scaling_amor.1} parent=16 // pred_fallthru
        _
      %416 = vnop
    $region17: #{scaling_amor.1} parent=1 // pred_fallthru
      _
    // Predicated region
    $region48: #{scaling_amor.1} parent=1 // pred_check
      _
    $region49: #{scaling_amor.1} parent=1 // pred_check_branch
      %418 = sbr.rel (0) target = $region51
    $region50: #{scaling_amor.1} parent=1 // pred_region
      %420 = vsyncadd [#allocation4], 112
      %s421 = sshll.u32 [#allocation3], 4
      %s422 = int_to_ptr.vmem [resolvable:$true] %s421
      %s423 = sshll.u32 %s4, 4
      %s424 = int_to_ptr.hbm [resolvable:$true] %s423
      %429 = dma.vmem_to_hbm [thread:$0]  %s422, 16, %s424, [#allocation4], 16, 16, 1
    $region51: #{scaling_amor.1} parent=1 // pred_fallthru
      _
    // Predicated region
    $region52: #{scaling_amor.1} parent=1 // pred_check
      _
    $region53: #{scaling_amor.1} parent=1 // pred_check_branch
      %431 = sbr.rel (0) target = $region55
    $region54: #{scaling_amor.1} parent=1 // pred_region
      _
    $region55: #{scaling_amor.1} parent=1 // pred_fallthru
      _
    // Predicated region
    $region56: #{scaling_amor.1} parent=1 // pred_check
      _
    $region57: #{scaling_amor.1} parent=1 // pred_check_branch
      %433 = sbr.rel (0) target = $region59
    $region58: #{scaling_amor.1} parent=1 // pred_region
      %435 = dma.done [#allocation4], 128
    $region59: #{scaling_amor.1} parent=1 // pred_fallthru
      _
    %436 = vsyncpa [#allocation4], 1

</llo_original>
